<compile_context>
chip_gen: v6e
topology: v6e:2x2x1
jax: 0.10.0
libtpu: 0.0.40
codegen_flags: <defaults>
</compile_context>

<pallas_src>
import functools

import jax
import jax.numpy as jnp
from jax.experimental import pallas as pl
from jax.experimental.pallas import tpu as pltpu


def _round_up(x, m):
    return (x + m - 1) // m * m


def _conv_stats_kernel(x_ref, w_ref, y_ref, stats_ref):
    """x_ref: (TM, K*C_in) bf16 im2col rows; w_ref: (K*C_in, Cp) bf16 weights.
       y_ref: (TM, Cp) f32 conv output tile.
       stats_ref: (1, 2, Cp) f32 per-tile [sum, sum_of_squares] over rows."""
    y = jnp.dot(x_ref[...], w_ref[...], preferred_element_type=jnp.float32)
    y_ref[...] = y
    s1 = jnp.sum(y, axis=0, keepdims=True)          # (1, Cp)
    s2 = jnp.sum(y * y, axis=0, keepdims=True)      # (1, Cp)  single-pass stats
    stats_ref[...] = jnp.concatenate([s1, s2], axis=0)[None]


def _bn_apply_kernel(y_ref, scale_ref, shift_ref, o_ref):
    # Folded BN: out = y * (gamma * rsqrt(var+eps)) + (beta - mean * that)
    o_ref[...] = y_ref[...] * scale_ref[...] + shift_ref[...]


@functools.partial(jax.jit,
                   static_argnames=("dilation", "use_bn", "eps", "block_rows",
                                    "compute_dtype"))
def conv_layer_forward(x, weight, gamma, beta, *, dilation=1, use_bn=True,
                       eps=1e-5, block_rows=512, compute_dtype=jnp.bfloat16):
    """x: (N, C_in, L) NCL (PyTorch convention). Returns (N, C_out, L) f32."""
    N, C_in, L = x.shape
    C_out, C_in_w, K = weight.shape
    assert C_in_w == C_in
    pad = int(dilation * (K - 1) / 2)
    # padding='same' reproduced exactly only for odd effective kernels (K=3 ok).
    assert (dilation * (K - 1)) % 2 == 0, "even effective kernel needs asymmetric pad"
    # TODO(synk): stride > 1 not implemented (module default stride=1).

    Kc = K * C_in
    Cp = _round_up(C_out, 128)              # lane-dense output channels
    M = N * L                               # batch folded into matmul rows
    TM = min(block_rows, _round_up(M, 8))   # sublane-aligned row tile
    M_pad = _round_up(M, TM)
    n_tiles = M_pad // TM

    # ---- wrapper glue (XLA): NCL->NLC, 'same' pad, im2col, row-flatten ----
    # TODO(synk): NCL<->NLC transposes and the K-fold im2col expansion remain
    # XLA prologue/epilogue ops; fusing them needs overlapping-halo BlockSpecs.
    x_nlc = jnp.transpose(x, (0, 2, 1)).astype(compute_dtype)       # (N, L, C_in)
    x_p = jnp.pad(x_nlc, ((0, 0), (pad, pad), (0, 0)))
    cols = [x_p[:, k * dilation:k * dilation + L, :] for k in range(K)]
    x_col = jnp.concatenate(cols, axis=-1).reshape(M, Kc)           # (N*L, K*C_in)
    if M_pad != M:    # zero pad rows -> zero conv rows -> no effect on BN sums
        x_col = jnp.pad(x_col, ((0, M_pad - M), (0, 0)))

    w_col = jnp.transpose(weight, (2, 1, 0)).reshape(Kc, C_out).astype(compute_dtype)
    w_col = jnp.pad(w_col, ((0, 0), (0, Cp - C_out)))               # (Kc, Cp)

    cparams = pltpu.CompilerParams(
        dimension_semantics=("parallel",),          # independent row tiles
        vmem_limit_bytes=32 * 1024 * 1024)          # explicit, safe on v5e/v6e/v7x

    flops = 2 * M_pad * Kc * Cp
    bytes_accessed = (M_pad * Kc * 2 + Kc * Cp * 2            # bf16 inputs
                      + M_pad * Cp * 4 + n_tiles * 2 * Cp * 4)  # f32 outputs

    y, stats = pl.pallas_call(
        _conv_stats_kernel,
        out_shape=(jax.ShapeDtypeStruct((M_pad, Cp), jnp.float32),
                   jax.ShapeDtypeStruct((n_tiles, 2, Cp), jnp.float32)),
        grid=(n_tiles,),
        in_specs=[pl.BlockSpec((TM, Kc), lambda i: (i, 0)),
                  pl.BlockSpec((Kc, Cp), lambda i: (0, 0))],   # weights resident
        out_specs=(pl.BlockSpec((TM, Cp), lambda i: (i, 0)),
                   pl.BlockSpec((1, 2, Cp), lambda i: (i, 0, 0))),
        compiler_params=cparams,
        cost_estimate=pl.CostEstimate(flops=int(flops), transcendentals=0,
                                      bytes_accessed=int(bytes_accessed)),
    )(x_col, w_col)

    if not use_bn:
        out_flat = y
    else:
        # ---- finalize BN stats: tiny per-channel math, single-pass variance ----
        tot = jnp.sum(stats, axis=0)                        # (2, Cp)
        cnt = jnp.float32(M)                                # true element count
        mean = tot[0] / cnt
        var = jnp.maximum(tot[1] / cnt - mean * mean, 0.0)  # biased (training) var
        inv = jax.lax.rsqrt(var + eps)
        g = jnp.pad(gamma.astype(jnp.float32), (0, Cp - C_out))
        b = jnp.pad(beta.astype(jnp.float32), (0, Cp - C_out))
        scale = (g * inv).reshape(1, Cp)
        shift = (b - mean * g * inv).reshape(1, Cp)
        # TODO(synk): BatchNorm1d running_mean/running_var buffer updates
        # (training-mode module state) are not produced here.
        out_flat = pl.pallas_call(
            _bn_apply_kernel,
            out_shape=jax.ShapeDtypeStruct((M_pad, Cp), jnp.float32),
            grid=(n_tiles,),
            in_specs=[pl.BlockSpec((TM, Cp), lambda i: (i, 0)),
                      pl.BlockSpec((1, Cp), lambda i: (0, 0)),
                      pl.BlockSpec((1, Cp), lambda i: (0, 0))],
            out_specs=pl.BlockSpec((TM, Cp), lambda i: (i, 0)),
            input_output_aliases={0: 0},                    # normalize in place
            compiler_params=cparams,
        )(y, scale, shift)

    out = out_flat[:M, :C_out].reshape(N, L, C_out)
    return jnp.transpose(out, (0, 2, 1))                    # back to NCL


def _reference(x, weight, gamma, beta, *, dilation=1, use_bn=True, eps=1e-5,
               compute_dtype=jnp.bfloat16):
    K = weight.shape[2]
    pad = dilation * (K - 1) // 2
    xq = x.astype(compute_dtype).astype(jnp.float32)
    wq = weight.astype(compute_dtype).astype(jnp.float32)
    out = jax.lax.conv_general_dilated(
        xq, wq, window_strides=(1,), padding=[(pad, pad)],
        rhs_dilation=(dilation,), dimension_numbers=('NCH', 'OIH', 'NCH'),
        precision=jax.lax.Precision.HIGHEST)
    if use_bn:
        m = out.mean(axis=(0, 2), keepdims=True)
        v = ((out - m) ** 2).mean(axis=(0, 2), keepdims=True)
        out = (out - m) * jax.lax.rsqrt(v + eps) * gamma.reshape(1, -1, 1) \
              + beta.reshape(1, -1, 1)
    return out


if __name__ == "__main__":
    key = jax.random.PRNGKey(0)
    k1, k2, k3, k4 = jax.random.split(key, 4)

    # Case 1: small module-consistent shapes (batch=2, C_in=4, C_out=8, L=16).
    N, C_in, C_out, L, K = 2, 4, 8, 16, 3
    x = jax.random.normal(k1, (N, C_in, L), dtype=jnp.float32)
    w = jax.random.normal(k2, (C_out, C_in, K), dtype=jnp.float32) * 0.1
    g = jnp.ones((C_out,), jnp.float32)     # BatchNorm1d affine init
    b = jnp.zeros((C_out,), jnp.float32)

    out = jax.block_until_ready(
        conv_layer_forward(x, w, g, b, dilation=1, use_bn=True))
    ref = _reference(x, w, g, b, dilation=1, use_bn=True)
    assert out.shape == (N, C_out, L)
    err = float(jnp.max(jnp.abs(out - ref)))
    assert err < 5e-4, f"case1 max err {err}"

    # Case 2: dilation=2, multiple row tiles + row padding, non-pow2 channels.
    N2, C_in2, C_out2, L2 = 2, 6, 10, 48
    x2 = jax.random.normal(k3, (N2, C_in2, L2), dtype=jnp.float32)
    w2 = jax.random.normal(k4, (C_out2, C_in2, K), dtype=jnp.float32) * 0.1
    g2 = jnp.linspace(0.5, 1.5, C_out2).astype(jnp.float32)
    b2 = jnp.linspace(-0.2, 0.2, C_out2).astype(jnp.float32)
    out2 = jax.block_until_ready(
        conv_layer_forward(x2, w2, g2, b2, dilation=2, use_bn=True,
                           block_rows=64))
    ref2 = _reference(x2, w2, g2, b2, dilation=2, use_bn=True)
    err2 = float(jnp.max(jnp.abs(out2 - ref2)))
    assert err2 < 5e-4, f"case2 max err {err2}"

    # Case 3: use_bn=False (conv only).
    out3 = jax.block_until_ready(
        conv_layer_forward(x, w, g, b, dilation=1, use_bn=False))
    ref3 = _reference(x, w, g, b, dilation=1, use_bn=False)
    err3 = float(jnp.max(jnp.abs(out3 - ref3)))
    assert err3 < 5e-4, f"case3 max err {err3}"

    print("KERNEL_OK")
</pallas_src>

<mosaic_0001>
module attributes {stable_mosaic.version = 11 : i64} {
  func.func @_conv_stats_kernel(%arg0: i32, %arg1: memref<32x12xbf16, #tpu.memory_space<vmem>>, %arg2: memref<12x128xbf16, #tpu.memory_space<vmem>>, %arg3: memref<32x128xf32, #tpu.memory_space<vmem>>, %arg4: memref<1x2x128xf32, #tpu.memory_space<vmem>>) attributes {dimension_semantics = [#tpu.dimension_semantics<parallel>], iteration_bounds = array<i64: 1>, scalar_prefetch = 0 : i64, scratch_operands = 0 : i64, tpu.core_type = #tpu.core_type<tc>, window_params = [{transform_indices = @transform_0, window_bounds = array<i64: 32, 12>}, {pipeline_mode = #tpu.pipeline_mode<synchronous>, transform_indices = @transform_1, window_bounds = array<i64: 12, 128>}, {transform_indices = @transform_2, window_bounds = array<i64: 32, 128>}, {transform_indices = @transform_3, window_bounds = array<i64: 1, 2, 128>}]} {
    %c0 = arith.constant 0 : index
    %c0_0 = arith.constant 0 : index
    %0 = vector.load %arg1[%c0, %c0_0] : memref<32x12xbf16, #tpu.memory_space<vmem>>, vector<32x12xbf16>
    %c0_1 = arith.constant 0 : index
    %c0_2 = arith.constant 0 : index
    %1 = vector.load %arg2[%c0_1, %c0_2] : memref<12x128xbf16, #tpu.memory_space<vmem>>, vector<12x128xbf16>
    %cst = arith.constant dense<0.000000e+00> : vector<32x128xf32>
    %2 = tpu.matmul %0, %1, %cst {dimension_numbers = #tpu.dot_dimension_numbers<[1], [0], [0], [1], [0, 0, 1, 1], [], []>} : vector<32x12xbf16>, vector<12x128xbf16>, vector<32x128xf32> -> vector<32x128xf32>
    %c0_3 = arith.constant 0 : index
    %c0_4 = arith.constant 0 : index
    %3 = vector.load %arg3[%c0_3, %c0_4] : memref<32x128xf32, #tpu.memory_space<vmem>>, vector<32x128xf32>
    tpu.vector_store %arg3[%c0_3, %c0_4], %2 {strides = array<i32>} : memref<32x128xf32, #tpu.memory_space<vmem>>, vector<32x128xf32>,
    %cst_5 = arith.constant dense<0.000000e+00> : vector<128xf32>
    %4 = vector.multi_reduction <add>, %2, %cst_5 [0] : vector<32x128xf32> to vector<128xf32>
    %5 = vector.shape_cast %4 : vector<128xf32> to vector<1x128xf32>
    %6 = arith.mulf %2, %2 : vector<32x128xf32>
    %cst_6 = arith.constant dense<0.000000e+00> : vector<128xf32>
    %7 = vector.multi_reduction <add>, %6, %cst_6 [0] : vector<32x128xf32> to vector<128xf32>
    %8 = vector.shape_cast %7 : vector<128xf32> to vector<1x128xf32>
    %9 = tpu.concatenate %5, %8 in 0 : vector<1x128xf32>, vector<1x128xf32> -> vector<2x128xf32>
    %10 = vector.shape_cast %9 : vector<2x128xf32> to vector<1x2x128xf32>
    %c0_7 = arith.constant 0 : index
    %c0_8 = arith.constant 0 : index
    %c0_9 = arith.constant 0 : index
    %11 = vector.load %arg4[%c0_7, %c0_8, %c0_9] : memref<1x2x128xf32, #tpu.memory_space<vmem>>, vector<1x2x128xf32>
    tpu.vector_store %arg4[%c0_7, %c0_8, %c0_9], %10 {strides = array<i32>} : memref<1x2x128xf32, #tpu.memory_space<vmem>>, vector<1x2x128xf32>,
    return
  }
  func.func @transform_0(%arg0: i32) -> (i32, i32) {
    %c0_i32 = arith.constant 0 : i32
    %c0_i32_0 = arith.constant 0 : i32
    return %arg0, %c0_i32 : i32, i32
  }
  func.func @transform_1(%arg0: i32) -> (i32, i32) {
    %c0_i32 = arith.constant 0 : i32
    %c0_i32_0 = arith.constant 0 : i32
    %c0_i32_1 = arith.constant 0 : i32
    return %c0_i32, %c0_i32_0 : i32, i32
  }
  func.func @transform_2(%arg0: i32) -> (i32, i32) {
    %c0_i32 = arith.constant 0 : i32
    %c0_i32_0 = arith.constant 0 : i32
    return %arg0, %c0_i32 : i32, i32
  }
  func.func @transform_3(%arg0: i32) -> (i32, i32, i32) {
    %c0_i32 = arith.constant 0 : i32
    %c0_i32_0 = arith.constant 0 : i32
    %c0_i32_1 = arith.constant 0 : i32
    return %arg0, %c0_i32, %c0_i32_0 : i32, i32, i32
  }
}

module attributes {stable_mosaic.version = 11 : i64} {
  func.func @_bn_apply_kernel(%arg0: i32, %arg1: memref<32x128xf32, #tpu.memory_space<vmem>>, %arg2: memref<1x128xf32, #tpu.memory_space<vmem>>, %arg3: memref<1x128xf32, #tpu.memory_space<vmem>>, %arg4: memref<32x128xf32, #tpu.memory_space<vmem>>) attributes {dimension_semantics = [#tpu.dimension_semantics<parallel>], iteration_bounds = array<i64: 1>, scalar_prefetch = 0 : i64, scratch_operands = 0 : i64, tpu.core_type = #tpu.core_type<tc>, window_params = [{transform_indices = @transform_0, window_bounds = array<i64: 32, 128>}, {pipeline_mode = #tpu.pipeline_mode<synchronous>, transform_indices = @transform_1, window_bounds = array<i64: 1, 128>}, {pipeline_mode = #tpu.pipeline_mode<synchronous>, transform_indices = @transform_2, window_bounds = array<i64: 1, 128>}, {transform_indices = @transform_3, window_bounds = array<i64: 32, 128>}]} {
    %c0 = arith.constant 0 : index
    %c0_0 = arith.constant 0 : index
    %0 = vector.load %arg1[%c0, %c0_0] : memref<32x128xf32, #tpu.memory_space<vmem>>, vector<32x128xf32>
    %c0_1 = arith.constant 0 : index
    %c0_2 = arith.constant 0 : index
    %1 = vector.load %arg2[%c0_1, %c0_2] : memref<1x128xf32, #tpu.memory_space<vmem>>, vector<1x128xf32>
    %2 = vector.broadcast %1 : vector<1x128xf32> to vector<32x128xf32>
    %3 = arith.mulf %0, %2 : vector<32x128xf32>
    %c0_3 = arith.constant 0 : index
    %c0_4 = arith.constant 0 : index
    %4 = vector.load %arg3[%c0_3, %c0_4] : memref<1x128xf32, #tpu.memory_space<vmem>>, vector<1x128xf32>
    %5 = vector.broadcast %4 : vector<1x128xf32> to vector<32x128xf32>
    %6 = arith.addf %3, %5 : vector<32x128xf32>
    %c0_5 = arith.constant 0 : index
    %c0_6 = arith.constant 0 : index
    %7 = vector.load %arg4[%c0_5, %c0_6] : memref<32x128xf32, #tpu.memory_space<vmem>>, vector<32x128xf32>
    tpu.vector_store %arg4[%c0_5, %c0_6], %6 {strides = array<i32>} : memref<32x128xf32, #tpu.memory_space<vmem>>, vector<32x128xf32>,
    return
  }
  func.func @transform_0(%arg0: i32) -> (i32, i32) {
    %c0_i32 = arith.constant 0 : i32
    %c0_i32_0 = arith.constant 0 : i32
    return %arg0, %c0_i32 : i32, i32
  }
  func.func @transform_1(%arg0: i32) -> (i32, i32) {
    %c0_i32 = arith.constant 0 : i32
    %c0_i32_0 = arith.constant 0 : i32
    %c0_i32_1 = arith.constant 0 : i32
    return %c0_i32, %c0_i32_0 : i32, i32
  }
  func.func @transform_2(%arg0: i32) -> (i32, i32) {
    %c0_i32 = arith.constant 0 : i32
    %c0_i32_0 = arith.constant 0 : i32
    %c0_i32_1 = arith.constant 0 : i32
    return %c0_i32, %c0_i32_0 : i32, i32
  }
  func.func @transform_3(%arg0: i32) -> (i32, i32) {
    %c0_i32 = arith.constant 0 : i32
    %c0_i32_0 = arith.constant 0 : i32
    return %arg0, %c0_i32 : i32, i32
  }
}

</mosaic_0001>

<llo_original>
// kernel: conv_layer_forward.2
$region0: #{conv_layer_forward.2}
  #allocation0 [shape = 'u32[]', space=smem, size = 0x4, offset = 0x4, fixed_abs, tag = 'smem constant byte address 0x4 - core index']
  #allocation1 [shape = 'u32[144,128]{1,0:T(1,128)}', space=vmem, size = 0x12000, scoped, tag = 'internal scratch']
  %s0 = inlined_call_operand.vmem [shape: bf16[32,12], index: 0, kind: input, shape index: {}]
  %s1 = inlined_call_operand.vmem [shape: bf16[12,128], index: 1, kind: input, shape index: {}]
  %s2 = inlined_call_operand.vmem [shape: f32[32,128], index: 2, kind: output, shape index: {0}]
  %s3 = inlined_call_operand.vmem [shape: f32[1,2,128], index: 3, kind: output, shape index: {1}]
  %4 = xla_tuple %s2, %s3
  %s5 = sld [smem:[#allocation0]]
  $region26: #{conv_layer_forward.2} parent=0
    _
  %s7 = ssub.s32 1, %s5
  %s8 = scalar_select 0, %s7, %s5
  // Predicated region
  $region2: #{conv_layer_forward.2} parent=0 // pred_check
    _
  $region3: #{conv_layer_forward.2} parent=0 // pred_check_branch
    %10 = sbr.rel (0) target = $region5
  $region4: #{conv_layer_forward.2} parent=0 // pred_region
    _
  $region5: #{conv_layer_forward.2} parent=0 // pred_fallthru
    _
  // Predicated region
  $region6: #{conv_layer_forward.2} parent=0 // pred_check
    _
  $region7: #{conv_layer_forward.2} parent=0 // pred_check_branch
    %12 = sbr.rel (0) target = $region9
  $region8: #{conv_layer_forward.2} parent=0 // pred_region
    _
  $region9: #{conv_layer_forward.2} parent=0 // pred_fallthru
    _
  %v14 = vld [vmem:[%s0] sm:$0xf]
  %v15 = vld [vmem:[%s0 + $0x4] sm:$0xf]
  %v16 = vld [vmem:[%s0 + $0x8] sm:$0xf]
  %v17 = vld [vmem:[%s0 + $0xc] sm:$0xf]
  %v18 = vld [vmem:[%s1] sm:$0xf]
  %v19 = vld [vmem:[%s1 + $0x4] sm:$0x3]
  %v24 = vunpack.c.l.b16 %v14
  %v25 = vunpack.c.l.b16 %v15
  %v26 = vunpack.c.l.b16 %v16
  %v27 = vunpack.c.l.b16 %v17
  %v28 = vpack.c.b16 %v25, %v24
  %v29 = vpack.c.b16 %v27, %v26
  %v32 = vunpack.c.l.b16 %v18
  %v33 = vunpack.c.l.b16 %v19
  %v34 = vpack.c.b16 %v33, %v32
  %vm35 = vcmask 97280
  %v37 = vsel %vm35, %v28, 0
  %v40 = vsel %vm35, %v29, 0
  %vm42 = vcmask 1045504
  %v44 = vsel %vm42, %v34, 0
  %46 = vmatprep.subr.bf16.mxu0 0
  %47 = vmatpush1.bf16.msra.mxu0 0
  %48 = vmatprep.subr.bf16.mxu0 0
  %49 = vmatpush1.bf16.msra.mxu0 0
  %50 = vmatprep.subr.bf16.mxu0 0
  %51 = vmatpush1.bf16.msra.mxu0 0
  %52 = vmatprep.subr.bf16.mxu0 0
  %53 = vmatpush1.bf16.msra.mxu0 0
  %54 = vmatprep.subr.bf16.mxu0 0
  %55 = vmatpush1.bf16.msra.mxu0 0
  %56 = vmatprep.subr.bf16.mxu0 0
  %57 = vmatpush1.bf16.msra.mxu0 0
  %58 = vmatprep.subr.bf16.mxu0 0
  %59 = vmatpush1.bf16.msra.mxu0 0
  %60 = vmatprep.subr.bf16.mxu0 0
  %61 = vmatpush1.bf16.msra.mxu0 %v44
  %62 = vmatprep.subr.bf16.mxu0 0
  %63 = vmatpush2.bf16.msra.mxu0 0
  %64 = vmatprep.subr.bf16.mxu0 0
  %65 = vmatpush2.bf16.msra.mxu0 0
  %66 = vmatprep.subr.bf16.mxu0 0
  %67 = vmatpush2.bf16.msra.mxu0 0
  %68 = vmatprep.subr.bf16.mxu0 0
  %69 = vmatpush2.bf16.msra.mxu0 0
  %70 = vmatprep.subr.bf16.mxu0 0
  %71 = vmatpush2.bf16.msra.mxu0 0
  %72 = vmatprep.subr.bf16.mxu0 0
  %73 = vmatpush2.bf16.msra.mxu0 0
  %74 = vmatprep.subr.bf16.mxu0 0
  %75 = vmatpush2.bf16.msra.mxu0 0
  %76 = vmatprep.subr.bf16.mxu0 0
  %77 = vmatpush2.bf16.msra.mxu0 0
  %78 = vmatprep.mubr.bf16.mxu0 0
  %79 = vmatmul.mubr.bf16.gmra.mxu0 %v37
  %v80 = vpop.f32.mrf.mxu0
  %v81 = vadd.f32 0.0, %v80
  %v82 = vpop.f32.mrf.mxu0
  %v83 = vpop.f32.mrf.mxu0
  %v84 = vadd.f32 0.0, %v83
  %v85 = vpop.f32.mrf.mxu0
  %86 = vmatprep.mubr.bf16.mxu0 0
  %87 = vmatmul.mubr.bf16.gmra.mxu0 %v40
  %v88 = vpop.f32.mrf.mxu0
  %v89 = vadd.f32 0.0, %v88
  %v90 = vpop.f32.mrf.mxu0
  %v91 = vpop.f32.mrf.mxu0
  %v92 = vadd.f32 0.0, %v91
  %v93 = vpop.f32.mrf.mxu0
  %94 = vdwg.mxu0
  %95 = vst [vmem:[%s2] sm:$0xff] %v81
  %96 = vst [vmem:[%s2 + $0x8] sm:$0xff] %v84
  %97 = vst [vmem:[%s2 + $0x10] sm:$0xff] %v89
  %98 = vst [vmem:[%s2 + $0x18] sm:$0xff] %v92
  %v99 = vadd.f32 %v81, %v84
  %v100 = vadd.f32 %v99, %v89
  %v101 = vadd.f32 %v100, %v92
  %v102 = vrot.slane %v101, 4
  %v103 = vadd.f32 %v101, %v102
  %v104 = vrot.slane %v103, 2
  %v105 = vadd.f32 %v103, %v104
  %v106 = vrot.slane %v105, 1
  %v107 = vadd.f32 %v105, %v106
  %v108 = vmul.f32 %v81, %v81
  %v109 = vmul.f32 %v84, %v84
  %v110 = vmul.f32 %v89, %v89
  %v111 = vmul.f32 %v92, %v92
  %v112 = vadd.f32 %v108, %v109
  %v113 = vadd.f32 %v112, %v110
  %v114 = vadd.f32 %v113, %v111
  %v115 = vrot.slane %v114, 4
  %v116 = vadd.f32 %v114, %v115
  %v117 = vrot.slane %v116, 2
  %v118 = vadd.f32 %v116, %v117
  %v119 = vrot.slane %v118, 1
  %v120 = vadd.f32 %v118, %v119
  %vm121 = vcmask 1040384
  %v122 = vsel %vm121, %v107, %v120
  %123 = vst [vmem:[%s3] sm:$0x3] %v122
  // Predicated region
  $region10: #{conv_layer_forward.2} parent=0 // pred_check
    _
  $region11: #{conv_layer_forward.2} parent=0 // pred_check_branch
    %125 = sbr.rel (0) target = $region13
  $region12: #{conv_layer_forward.2} parent=0 // pred_region
    _
  $region13: #{conv_layer_forward.2} parent=0 // pred_fallthru
    _
  // Predicated region
  $region14: #{conv_layer_forward.2} parent=0 // pred_check
    _
  $region15: #{conv_layer_forward.2} parent=0 // pred_check_branch
    %127 = sbr.rel (0) target = $region17
  $region16: #{conv_layer_forward.2} parent=0 // pred_region
    _
  $region17: #{conv_layer_forward.2} parent=0 // pred_fallthru
    _
  // Predicated region
  $region18: #{conv_layer_forward.2} parent=0 // pred_check
    _
  $region19: #{conv_layer_forward.2} parent=0 // pred_check_branch
    %129 = sbr.rel (0) target = $region21
  $region20: #{conv_layer_forward.2} parent=0 // pred_region
    _
  $region21: #{conv_layer_forward.2} parent=0 // pred_fallthru
    _
  // Predicated region
  $region22: #{conv_layer_forward.2} parent=0 // pred_check
    _
  $region23: #{conv_layer_forward.2} parent=0 // pred_check_branch
    %131 = sbr.rel (0) target = $region25
  $region24: #{conv_layer_forward.2} parent=0 // pred_region
    _
  $region25: #{conv_layer_forward.2} parent=0 // pred_fallthru
    _

// kernel: conv_layer_forward.3
$region0: #{conv_layer_forward.3}
  #allocation0 [shape = 'u32[]', space=smem, size = 0x4, offset = 0x4, fixed_abs, tag = 'smem constant byte address 0x4 - core index']
  #allocation1 [shape = 'u32[144,128]{1,0:T(1,128)}', space=vmem, size = 0x12000, scoped, tag = 'internal scratch']
  %s0 = inlined_call_operand.vmem [shape: f32[32,128], index: 0, kind: input, shape index: {}, may-alias: {0,3}]
  %s1 = inlined_call_operand.vmem [shape: f32[1,128], index: 1, kind: input, shape index: {}]
  %s2 = inlined_call_operand.vmem [shape: f32[1,128], index: 2, kind: input, shape index: {}]
  %s3 = inlined_call_operand.vmem [shape: f32[32,128], index: 3, kind: output, shape index: {}, may-alias: {0,3}]
  %s4 = sld [smem:[#allocation0]]
  $region22: #{conv_layer_forward.3} parent=0
    _
  %s6 = ssub.s32 1, %s4
  %s7 = scalar_select 0, %s6, %s4
  // Predicated region
  $region2: #{conv_layer_forward.3} parent=0 // pred_check
    _
  $region3: #{conv_layer_forward.3} parent=0 // pred_check_branch
    %9 = sbr.rel (0) target = $region5
  $region4: #{conv_layer_forward.3} parent=0 // pred_region
    _
  $region5: #{conv_layer_forward.3} parent=0 // pred_fallthru
    _
  // Predicated region
  $region6: #{conv_layer_forward.3} parent=0 // pred_check
    _
  $region7: #{conv_layer_forward.3} parent=0 // pred_check_branch
    %11 = sbr.rel (0) target = $region9
  $region8: #{conv_layer_forward.3} parent=0 // pred_region
    _
  $region9: #{conv_layer_forward.3} parent=0 // pred_fallthru
    _
  // Predicated region
  $region10: #{conv_layer_forward.3} parent=0 // pred_check
    _
  $region11: #{conv_layer_forward.3} parent=0 // pred_check_branch
    %13 = sbr.rel (0) target = $region13
  $region12: #{conv_layer_forward.3} parent=0 // pred_region
    _
  $region13: #{conv_layer_forward.3} parent=0 // pred_fallthru
    _
  %v14 = vld [vmem:[%s0] sm:$0xff]
  %v15 = vld [vmem:[%s0 + $0x8] sm:$0xff]
  %v16 = vld [vmem:[%s0 + $0x10] sm:$0xff]
  %v17 = vld [vmem:[%s0 + $0x18] sm:$0xff]
  %v18 = vld [vmem:[%s1] sm:$0x1]
  %v20 = vlaneseq
  %v21 = vshrl.u32 %v20, 7
  %v22 = vsub.s32 0, %v21
  %v23 = vrot.slane %v18, %v22
  %v25 = vmul.f32 %v14, %v23
  %v26 = vmul.f32 %v15, %v23
  %v27 = vmul.f32 %v16, %v23
  %v28 = vmul.f32 %v17, %v23
  %v29 = vld [vmem:[%s2] sm:$0x1]
  %v31 = vlaneseq
  %v32 = vshrl.u32 %v31, 7
  %v33 = vsub.s32 0, %v32
  %v34 = vrot.slane %v29, %v33
  %v36 = vadd.f32 %v25, %v34
  %v37 = vadd.f32 %v26, %v34
  %v38 = vadd.f32 %v27, %v34
  %v39 = vadd.f32 %v28, %v34
  %40 = vst [vmem:[%s3] sm:$0xff] %v36
  %41 = vst [vmem:[%s3 + $0x8] sm:$0xff] %v37
  %42 = vst [vmem:[%s3 + $0x10] sm:$0xff] %v38
  %43 = vst [vmem:[%s3 + $0x18] sm:$0xff] %v39
  // Predicated region
  $region14: #{conv_layer_forward.3} parent=0 // pred_check
    _
  $region15: #{conv_layer_forward.3} parent=0 // pred_check_branch
    %45 = sbr.rel (0) target = $region17
  $region16: #{conv_layer_forward.3} parent=0 // pred_region
    _
  $region17: #{conv_layer_forward.3} parent=0 // pred_fallthru
    _
  // Predicated region
  $region18: #{conv_layer_forward.3} parent=0 // pred_check
    _
  $region19: #{conv_layer_forward.3} parent=0 // pred_check_branch
    %47 = sbr.rel (0) target = $region21
  $region20: #{conv_layer_forward.3} parent=0 // pred_region
    _
  $region21: #{conv_layer_forward.3} parent=0 // pred_fallthru
    _

</llo_original>
